<compile_context>
chip_gen: v7x
topology: tpu7x:2x2x1
jax: 0.10.0
libtpu: 0.0.40
codegen_flags: <defaults>
</compile_context>

<pallas_src>
import jax
import jax.numpy as jnp
from jax.experimental import pallas as pl
from jax.experimental.pallas import tpu as pltpu


_NEG_BIAS = -1e30  # f32 bias for padded classes -> exp(padded logit) == 0


def _round_up(x, m):
    return ((x + m - 1) // m) * m


def _ce_wrapper_kernel(labels_ref, x_ref, w1_ref, b1_ref, w2_ref, b2_ref,
                       out_ref):
    # Inner model: y = relu(x @ W1 + b1) @ W2 + b2  (single merged K=D0+D1 dot)
    h = jnp.dot(x_ref[...], w1_ref[...], preferred_element_type=jnp.float32)
    h = jnp.maximum(h + b1_ref[...], 0.0)                              # (TB, Hp) f32
    y = jnp.dot(h.astype(w2_ref.dtype), w2_ref[...],
                preferred_element_type=jnp.float32) + b2_ref[...]      # (TB, Cp) f32

    # torch.gather(y, -1, labels.unsqueeze(-1)) via lane-iota compare + reduce.
    tb, cp = y.shape
    cls = jax.lax.broadcasted_iota(jnp.int32, (tb, cp), dimension=1)
    label_logit = jnp.sum(jnp.where(cls == labels_ref[...], y, 0.0),
                          axis=-1, keepdims=True)                      # (TB, 1)

    # One exp over the lane-dense class slab; padded classes carry a -1e30
    # f32 bias so they contribute exactly 0 to the sum.
    e = jnp.exp(y - label_logit)
    out_ref[...] = jnp.sum(e, axis=-1, keepdims=True)                  # (TB, 1)


def cross_entropy_wrapper_multi_input(labels, x0, x1, w1, b1, w2, b2,
                                      *, tile_b=512,
                                      compute_dtype=jnp.bfloat16,
                                      vmem_limit_bytes=None):
    """labels: (B,) int; x0: (B, D0); x1: (B, D1); weights stored (in, out).

    Returns sum(exp(y - y[labels]), -1, keepdims=True) with
    y = relu(concat(x0, x1) @ w1 + b1) @ w2 + b2, as (B, 1) float32.

    Precondition: 0 <= labels < C (out-of-range labels silently behave as if
    the gathered logit were 0, unlike torch.gather which would error).
    """
    B, D0 = x0.shape
    _, D1 = x1.shape
    Din, H = w1.shape
    assert Din == D0 + D1
    Hc, C = w2.shape
    assert Hc == H

    # ---- one-time parameter prep (outside the kernel) ----------------------
    # Pad hidden dim to a 128 multiple (zeros: relu(0)=0, zero W2 rows add 0).
    Hp = _round_up(H, 128)
    # Pad class dim to 128; padded classes get a -1e30 f32 bias -> exp == 0.
    Cp = _round_up(C, 128)
    w1p = jnp.pad(w1, ((0, 0), (0, Hp - H))).astype(compute_dtype)
    b1p = jnp.pad(b1.astype(jnp.float32), (0, Hp - H)).reshape(1, Hp)
    w2p = jnp.pad(w2, ((0, Hp - H), (0, Cp - C))).astype(compute_dtype)
    b2p = jnp.concatenate(
        [b2.astype(jnp.float32),
         jnp.full((Cp - C,), _NEG_BIAS, dtype=jnp.float32)]).reshape(1, Cp)
    # NOTE: b2p must stay float32 so the -1e30 padding keeps f32 exponent range.

    # ---- batch tile selection ----------------------------------------------
    # Large tiles amortize the ~0.35 us per-grid-step cost; keep TB a multiple
    # of 128 (lane/sublane alignment).  On v7x (2 TensorCores) a single giant
    # tile would leave one core idle, so cap TB to keep >= 2 parallel steps
    # whenever the batch is big enough to split.
    TB = _round_up(max(tile_b, 128), 128)
    if B > 128:
        TB = min(TB, _round_up(-(-B // 2), 128))
    Bp = _round_up(max(B, 1), TB)
    pad_b = Bp - B

    # Concat the two inputs once (folded into the pad/cast pass we already do)
    # so the kernel runs a single K=D0+D1 first-layer contraction.
    xcat = jnp.concatenate([x0, x1], axis=-1)
    xcat = jnp.pad(xcat, ((0, pad_b), (0, 0))).astype(compute_dtype)
    lab2d = jnp.pad(labels.astype(jnp.int32).reshape(B, 1),
                    ((0, pad_b), (0, 0)))

    grid = (Bp // TB,)
    batched = lambda w: pl.BlockSpec((TB, w), lambda i: (i, 0))
    resident = lambda s: pl.BlockSpec(s, lambda i: (0, 0))  # VMEM-resident

    out = pl.pallas_call(
        _ce_wrapper_kernel,
        out_shape=jax.ShapeDtypeStruct((Bp, 1), jnp.float32),
        grid=grid,
        in_specs=[
            batched(1),            # labels
            batched(Din),          # x0 || x1
            resident((Din, Hp)),   # W1   (constant index_map -> stays in VMEM)
            resident((1, Hp)),     # b1   (f32)
            resident((Hp, Cp)),    # W2
            resident((1, Cp)),     # b2   (f32, -1e30 on padded classes)
        ],
        out_specs=batched(1),
        compiler_params=pltpu.CompilerParams(
            dimension_semantics=("parallel",),
            vmem_limit_bytes=vmem_limit_bytes),
    )(lab2d, xcat, w1p, b1p, w2p, b2p)

    return out[:B]


def _reference(labels, x0, x1, w1, b1, w2, b2):
    x = jnp.concatenate([x0, x1], axis=-1)
    h = jnp.maximum(x @ w1 + b1, 0.0)
    y = h @ w2 + b2
    label_logit = jnp.take_along_axis(y, labels[:, None].astype(jnp.int32),
                                      axis=-1)
    return jnp.sum(jnp.exp(y - label_logit), axis=-1, keepdims=True)


if __name__ == "__main__":
    # Small shapes; B deliberately a non-multiple of the tile so the tile cap
    # kicks in (TB=256, grid=(2,)) and the pad/slice path is exercised.
    B, D0, D1, H, C = 300, 16, 16, 64, 10

    key = jax.random.PRNGKey(0)
    k_x0, k_x1, k_w1, k_b1, k_w2, k_b2, k_lab = jax.random.split(key, 7)

    x0 = jax.random.normal(k_x0, (B, D0), dtype=jnp.float32)
    x1 = jax.random.normal(k_x1, (B, D1), dtype=jnp.float32)
    # Synthetic inner-model parameters, stored (in, out) (torch Linear is (out, in)).
    w1 = 0.1 * jax.random.normal(k_w1, (D0 + D1, H), dtype=jnp.float32)
    b1 = 0.1 * jax.random.normal(k_b1, (H,), dtype=jnp.float32)
    w2 = 0.1 * jax.random.normal(k_w2, (H, C), dtype=jnp.float32)
    b2 = 0.1 * jax.random.normal(k_b2, (C,), dtype=jnp.float32)
    labels = jax.random.randint(k_lab, (B,), 0, C, dtype=jnp.int32)

    ref = _reference(labels, x0, x1, w1, b1, w2, b2)

    # f32 operand path: tight check against the JAX reference.
    out_f32 = cross_entropy_wrapper_multi_input(
        labels, x0, x1, w1, b1, w2, b2, tile_b=512, compute_dtype=jnp.float32)
    out_f32 = jax.block_until_ready(out_f32)
    assert out_f32.shape == (B, 1)
    assert jnp.allclose(out_f32, ref, rtol=1e-4, atol=1e-4), (out_f32, ref)

    # bf16 operand path (default; MXU-friendly on v5e/v6e/v7x, f32 accumulation):
    # loose check.
    out_bf16 = cross_entropy_wrapper_multi_input(
        labels, x0, x1, w1, b1, w2, b2, tile_b=512, compute_dtype=jnp.bfloat16)
    out_bf16 = jax.block_until_ready(out_bf16)
    assert out_bf16.shape == (B, 1)
    assert jnp.allclose(out_bf16, ref, rtol=5e-2, atol=5e-2), (out_bf16, ref)

    print("KERNEL_OK")
</pallas_src>

<mosaic_0001>
module attributes {stable_mosaic.version = 11 : i64} {
  func.func @_ce_wrapper_kernel(%arg0: i32, %arg1: memref<256x1xi32, #tpu.memory_space<vmem>>, %arg2: memref<256x32xf32, #tpu.memory_space<vmem>>, %arg3: memref<32x128xf32, #tpu.memory_space<vmem>>, %arg4: memref<1x128xf32, #tpu.memory_space<vmem>>, %arg5: memref<128x128xf32, #tpu.memory_space<vmem>>, %arg6: memref<1x128xf32, #tpu.memory_space<vmem>>, %arg7: memref<256x1xf32, #tpu.memory_space<vmem>>) attributes {dimension_semantics = [#tpu.dimension_semantics<parallel>], iteration_bounds = array<i64: 2>, scalar_prefetch = 0 : i64, scratch_operands = 0 : i64, tpu.core_type = #tpu.core_type<tc>, window_params = [{transform_indices = @transform_0, window_bounds = array<i64: 256, 1>}, {transform_indices = @transform_1, window_bounds = array<i64: 256, 32>}, {pipeline_mode = #tpu.pipeline_mode<synchronous>, transform_indices = @transform_2, window_bounds = array<i64: 32, 128>}, {pipeline_mode = #tpu.pipeline_mode<synchronous>, transform_indices = @transform_3, window_bounds = array<i64: 1, 128>}, {pipeline_mode = #tpu.pipeline_mode<synchronous>, transform_indices = @transform_4, window_bounds = array<i64: 128, 128>}, {pipeline_mode = #tpu.pipeline_mode<synchronous>, transform_indices = @transform_5, window_bounds = array<i64: 1, 128>}, {transform_indices = @transform_6, window_bounds = array<i64: 256, 1>}]} {
    %c0 = arith.constant 0 : index
    %c0_0 = arith.constant 0 : index
    %0 = vector.load %arg2[%c0, %c0_0] : memref<256x32xf32, #tpu.memory_space<vmem>>, vector<256x32xf32>
    %c0_1 = arith.constant 0 : index
    %c0_2 = arith.constant 0 : index
    %1 = vector.load %arg3[%c0_1, %c0_2] : memref<32x128xf32, #tpu.memory_space<vmem>>, vector<32x128xf32>
    %cst = arith.constant dense<0.000000e+00> : vector<256x128xf32>
    %2 = tpu.matmul %0, %1, %cst {dimension_numbers = #tpu.dot_dimension_numbers<[1], [0], [0], [1], [0, 0, 1, 1], [], []>} : vector<256x32xf32>, vector<32x128xf32>, vector<256x128xf32> -> vector<256x128xf32>
    %c0_3 = arith.constant 0 : index
    %c0_4 = arith.constant 0 : index
    %3 = vector.load %arg4[%c0_3, %c0_4] : memref<1x128xf32, #tpu.memory_space<vmem>>, vector<1x128xf32>
    %4 = vector.broadcast %3 : vector<1x128xf32> to vector<256x128xf32>
    %5 = arith.addf %2, %4 : vector<256x128xf32>
    %cst_5 = arith.constant 0.000000e+00 : f32
    %6 = vector.broadcast %cst_5 : f32 to vector<256x128xf32>
    %7 = arith.maximumf %5, %6 : vector<256x128xf32>
    %c0_6 = arith.constant 0 : index
    %c0_7 = arith.constant 0 : index
    %8 = vector.load %arg5[%c0_6, %c0_7] : memref<128x128xf32, #tpu.memory_space<vmem>>, vector<128x128xf32>
    %cst_8 = arith.constant dense<0.000000e+00> : vector<256x128xf32>
    %9 = tpu.matmul %7, %8, %cst_8 {dimension_numbers = #tpu.dot_dimension_numbers<[1], [0], [0], [1], [0, 0, 1, 1], [], []>} : vector<256x128xf32>, vector<128x128xf32>, vector<256x128xf32> -> vector<256x128xf32>
    %c0_9 = arith.constant 0 : index
    %c0_10 = arith.constant 0 : index
    %10 = vector.load %arg6[%c0_9, %c0_10] : memref<1x128xf32, #tpu.memory_space<vmem>>, vector<1x128xf32>
    %11 = vector.broadcast %10 : vector<1x128xf32> to vector<256x128xf32>
    %12 = arith.addf %9, %11 : vector<256x128xf32>
    %13 = tpu.iota {dimensions = array<i32: 1>} : vector<256x128xi32>
    %c0_11 = arith.constant 0 : index
    %c0_12 = arith.constant 0 : index
    %14 = vector.load %arg1[%c0_11, %c0_12] : memref<256x1xi32, #tpu.memory_space<vmem>>, vector<256x1xi32>
    %15 = vector.broadcast %14 : vector<256x1xi32> to vector<256x128xi32>
    %16 = arith.cmpi eq, %13, %15 : vector<256x128xi32>
    %cst_13 = arith.constant 0.000000e+00 : f32
    %17 = vector.broadcast %cst_13 : f32 to vector<256x128xf32>
    %18 = arith.select %16, %12, %17 : vector<256x128xi1>, vector<256x128xf32>
    %cst_14 = arith.constant dense<0.000000e+00> : vector<256xf32>
    %19 = vector.multi_reduction <add>, %18, %cst_14 [1] : vector<256x128xf32> to vector<256xf32>
    %20 = vector.shape_cast %19 : vector<256xf32> to vector<256x1xf32>
    %21 = vector.broadcast %20 : vector<256x1xf32> to vector<256x128xf32>
    %22 = arith.subf %12, %21 : vector<256x128xf32>
    %23 = math.exp %22 : vector<256x128xf32>
    %cst_15 = arith.constant dense<0.000000e+00> : vector<256xf32>
    %24 = vector.multi_reduction <add>, %23, %cst_15 [1] : vector<256x128xf32> to vector<256xf32>
    %25 = vector.shape_cast %24 : vector<256xf32> to vector<256x1xf32>
    %c0_16 = arith.constant 0 : index
    %c0_17 = arith.constant 0 : index
    %26 = vector.load %arg7[%c0_16, %c0_17] : memref<256x1xf32, #tpu.memory_space<vmem>>, vector<256x1xf32>
    tpu.vector_store %arg7[%c0_16, %c0_17], %25 {strides = array<i32>} : memref<256x1xf32, #tpu.memory_space<vmem>>, vector<256x1xf32>,
    return
  }
  func.func @transform_0(%arg0: i32) -> (i32, i32) {
    %c0_i32 = arith.constant 0 : i32
    %c0_i32_0 = arith.constant 0 : i32
    return %arg0, %c0_i32 : i32, i32
  }
  func.func @transform_1(%arg0: i32) -> (i32, i32) {
    %c0_i32 = arith.constant 0 : i32
    %c0_i32_0 = arith.constant 0 : i32
    return %arg0, %c0_i32 : i32, i32
  }
  func.func @transform_2(%arg0: i32) -> (i32, i32) {
    %c0_i32 = arith.constant 0 : i32
    %c0_i32_0 = arith.constant 0 : i32
    %c0_i32_1 = arith.constant 0 : i32
    return %c0_i32, %c0_i32_0 : i32, i32
  }
  func.func @transform_3(%arg0: i32) -> (i32, i32) {
    %c0_i32 = arith.constant 0 : i32
    %c0_i32_0 = arith.constant 0 : i32
    %c0_i32_1 = arith.constant 0 : i32
    return %c0_i32, %c0_i32_0 : i32, i32
  }
  func.func @transform_4(%arg0: i32) -> (i32, i32) {
    %c0_i32 = arith.constant 0 : i32
    %c0_i32_0 = arith.constant 0 : i32
    %c0_i32_1 = arith.constant 0 : i32
    return %c0_i32, %c0_i32_0 : i32, i32
  }
  func.func @transform_5(%arg0: i32) -> (i32, i32) {
    %c0_i32 = arith.constant 0 : i32
    %c0_i32_0 = arith.constant 0 : i32
    %c0_i32_1 = arith.constant 0 : i32
    return %c0_i32, %c0_i32_0 : i32, i32
  }
  func.func @transform_6(%arg0: i32) -> (i32, i32) {
    %c0_i32 = arith.constant 0 : i32
    %c0_i32_0 = arith.constant 0 : i32
    return %arg0, %c0_i32 : i32, i32
  }
}

</mosaic_0001>

<llo_original>
// kernel: tpu_custom_call.1
$region0: #{tpu_custom_call.1}
  #allocation0 [shape = 'u32[]', space=smem, size = 0x4, offset = 0x4, fixed_abs, tag = 'smem constant byte address 0x4 - core index']
  #allocation1 [shape = 'u32[144,128]{1,0:T(1,128)}', space=vmem, size = 0x12000, scoped, tag = 'internal scratch']
  %s0 = inlined_call_operand.vmem [shape: s32[512,1], index: 0, kind: input, shape index: {}]
  %s1 = inlined_call_operand.vmem [shape: f32[512,32], index: 1, kind: input, shape index: {}]
  %s2 = inlined_call_operand.vmem [shape: f32[32,128], index: 2, kind: input, shape index: {}]
  %s3 = inlined_call_operand.vmem [shape: f32[1,128], index: 3, kind: input, shape index: {}]
  %s4 = inlined_call_operand.vmem [shape: f32[128,128], index: 4, kind: input, shape index: {}]
  %s5 = inlined_call_operand.vmem [shape: f32[1,128], index: 5, kind: input, shape index: {}]
  %s6 = inlined_call_operand.vmem [shape: f32[512,1], index: 6, kind: output, shape index: {}]
  %s7 = sld [smem:[#allocation0]]
  $region57: #{tpu_custom_call.1} parent=0
    _
  %s9 = ssub.s32 1, %s7
  %s10 = scalar_select 0, %s9, %s7
  loop: start=0, step=1, limit=4
  $region2: #{tpu_custom_call.1} parent=0 // loop_pre_header
    _
  $region3: #{tpu_custom_call.1} parent=0 // loop_header
    %s12 = sphi 0, %s16
    %p13 = scmp.ge.s32.totalorder %s12, 4
    %s22 = sphi 0, %s24
    %s25 = sphi 0, %s22
    %s26 = sphi 0, %s25
    %s42 = sphi 0, %s26
    %s48 = sphi 0, %s50
    %s51 = sphi 0, %s48
    %s52 = sphi 0, %s51
    %s68 = sphi 0, %s52
    %s72 = sphi 0, %s72
    %s74 = sphi 0, %s72
    %s75 = sphi 0, %s74
    %s89 = sphi 0, %s75
    %s93 = sphi 0, %s93
    %s95 = sphi 0, %s93
    %s96 = sphi 0, %s95
    %s110 = sphi 0, %s96
    %s114 = sphi 0, %s114
    %s116 = sphi 0, %s114
    %s117 = sphi 0, %s116
    %s131 = sphi 0, %s117
    %s135 = sphi 0, %s135
    %s137 = sphi 0, %s135
    %s138 = sphi 0, %s137
    %s152 = sphi 0, %s138
    %s158 = sphi 0, %s160
    %s161 = sphi 0, %s158
    %s162 = sphi 0, %s161
    %s178 = sphi 0, %s162
  $region4: #{tpu_custom_call.1} parent=0 // loop_header_branch
    %15 = sbr.rel (%p13) target = $region8
  $region5: #{tpu_custom_call.1} parent=0 // loop_body
    %s17 = ssub.s32 %s12, 1
    %s18 = ssub.s32 %s12, 2
    %s19 = sadd.s32 %s12, 1
    %s20 = ssub.s32 %s12, %s19
    %p21 = scmp.eq.s32.totalorder %s20, 0
    %s23 = sadd.s32 %s22, 1
    %s24 = scalar_select %p21, %s22, %s23
    %p27 = pneg %p21
    %p28 = scmp.eq.s32.totalorder %s12, 1
    %p29 = por %p27, %p28
    %p30 = scmp.ne.s32.totalorder %s22, %s25
    %p31 = scmp.eq.s32.totalorder %s12, 0
    %p32 = por %p30, %p31
    %p33 = scmp.ne.s32.totalorder %s22, %s25
    %p34 = scmp.eq.s32.totalorder %s17, 1
    %p35 = por %p33, %p34
    %p36 = scmp.ne.s32.totalorder %s25, %s26
    %p37 = scmp.eq.s32.totalorder %s17, 0
    %p38 = por %p36, %p37
    %p39 = scmp.ne.s32.totalorder %s25, %s26
    %p40 = scmp.eq.s32.totalorder %s18, 1
    %p41 = por %p39, %p40
    %p43 = scmp.ne.s32.totalorder %s26, %s42
    %p44 = scmp.eq.s32.totalorder %s18, 0
    %p45 = por %p43, %p44
    %s46 = ssub.s32 %s12, %s19
    %p47 = scmp.eq.s32.totalorder %s46, 0
    %s49 = sadd.s32 %s48, 1
    %s50 = scalar_select %p47, %s48, %s49
    %p53 = pneg %p47
    %p54 = scmp.eq.s32.totalorder %s12, 1
    %p55 = por %p53, %p54
    %p56 = scmp.ne.s32.totalorder %s48, %s51
    %p57 = scmp.eq.s32.totalorder %s12, 0
    %p58 = por %p56, %p57
    %p59 = scmp.ne.s32.totalorder %s48, %s51
    %p60 = scmp.eq.s32.totalorder %s17, 1
    %p61 = por %p59, %p60
    %p62 = scmp.ne.s32.totalorder %s51, %s52
    %p63 = scmp.eq.s32.totalorder %s17, 0
    %p64 = por %p62, %p63
    %p65 = scmp.ne.s32.totalorder %s51, %s52
    %p66 = scmp.eq.s32.totalorder %s18, 1
    %p67 = por %p65, %p66
    %p69 = scmp.ne.s32.totalorder %s52, %s68
    %p70 = scmp.eq.s32.totalorder %s18, 0
    %p71 = por %p69, %p70
    %s73 = sadd.s32 %s72, 1
    %p76 = scmp.eq.s32.totalorder %s12, 1
    %p77 = scmp.ne.s32.totalorder %s72, %s74
    %p78 = scmp.eq.s32.totalorder %s12, 0
    %p79 = por %p77, %p78
    %p80 = scmp.ne.s32.totalorder %s72, %s74
    %p81 = scmp.eq.s32.totalorder %s17, 1
    %p82 = por %p80, %p81
    %p83 = scmp.ne.s32.totalorder %s74, %s75
    %p84 = scmp.eq.s32.totalorder %s17, 0
    %p85 = por %p83, %p84
    %p86 = scmp.ne.s32.totalorder %s74, %s75
    %p87 = scmp.eq.s32.totalorder %s18, 1
    %p88 = por %p86, %p87
    %p90 = scmp.ne.s32.totalorder %s75, %s89
    %p91 = scmp.eq.s32.totalorder %s18, 0
    %p92 = por %p90, %p91
    %s94 = sadd.s32 %s93, 1
    %p97 = scmp.eq.s32.totalorder %s12, 1
    %p98 = scmp.ne.s32.totalorder %s93, %s95
    %p99 = scmp.eq.s32.totalorder %s12, 0
    %p100 = por %p98, %p99
    %p101 = scmp.ne.s32.totalorder %s93, %s95
    %p102 = scmp.eq.s32.totalorder %s17, 1
    %p103 = por %p101, %p102
    %p104 = scmp.ne.s32.totalorder %s95, %s96
    %p105 = scmp.eq.s32.totalorder %s17, 0
    %p106 = por %p104, %p105
    %p107 = scmp.ne.s32.totalorder %s95, %s96
    %p108 = scmp.eq.s32.totalorder %s18, 1
    %p109 = por %p107, %p108
    %p111 = scmp.ne.s32.totalorder %s96, %s110
    %p112 = scmp.eq.s32.totalorder %s18, 0
    %p113 = por %p111, %p112
    %s115 = sadd.s32 %s114, 1
    %p118 = scmp.eq.s32.totalorder %s12, 1
    %p119 = scmp.ne.s32.totalorder %s114, %s116
    %p120 = scmp.eq.s32.totalorder %s12, 0
    %p121 = por %p119, %p120
    %p122 = scmp.ne.s32.totalorder %s114, %s116
    %p123 = scmp.eq.s32.totalorder %s17, 1
    %p124 = por %p122, %p123
    %p125 = scmp.ne.s32.totalorder %s116, %s117
    %p126 = scmp.eq.s32.totalorder %s17, 0
    %p127 = por %p125, %p126
    %p128 = scmp.ne.s32.totalorder %s116, %s117
    %p129 = scmp.eq.s32.totalorder %s18, 1
    %p130 = por %p128, %p129
    %p132 = scmp.ne.s32.totalorder %s117, %s131
    %p133 = scmp.eq.s32.totalorder %s18, 0
    %p134 = por %p132, %p133
    %s136 = sadd.s32 %s135, 1
    %p139 = scmp.eq.s32.totalorder %s12, 1
    %p140 = scmp.ne.s32.totalorder %s135, %s137
    %p141 = scmp.eq.s32.totalorder %s12, 0
    %p142 = por %p140, %p141
    %p143 = scmp.ne.s32.totalorder %s135, %s137
    %p144 = scmp.eq.s32.totalorder %s17, 1
    %p145 = por %p143, %p144
    %p146 = scmp.ne.s32.totalorder %s137, %s138
    %p147 = scmp.eq.s32.totalorder %s17, 0
    %p148 = por %p146, %p147
    %p149 = scmp.ne.s32.totalorder %s137, %s138
    %p150 = scmp.eq.s32.totalorder %s18, 1
    %p151 = por %p149, %p150
    %p153 = scmp.ne.s32.totalorder %s138, %s152
    %p154 = scmp.eq.s32.totalorder %s18, 0
    %p155 = por %p153, %p154
    %s156 = ssub.s32 %s12, %s19
    %p157 = scmp.eq.s32.totalorder %s156, 0
    %s159 = sadd.s32 %s158, 1
    %s160 = scalar_select %p157, %s158, %s159
    %p163 = pneg %p157
    %p164 = scmp.eq.s32.totalorder %s12, 1
    %p165 = por %p163, %p164
    %p166 = scmp.ne.s32.totalorder %s158, %s161
    %p167 = scmp.eq.s32.totalorder %s12, 0
    %p168 = por %p166, %p167
    %p169 = scmp.ne.s32.totalorder %s158, %s161
    %p170 = scmp.eq.s32.totalorder %s17, 1
    %p171 = por %p169, %p170
    %p172 = scmp.ne.s32.totalorder %s161, %s162
    %p173 = scmp.eq.s32.totalorder %s17, 0
    %p174 = por %p172, %p173
    %p175 = scmp.ne.s32.totalorder %s161, %s162
    %p176 = scmp.eq.s32.totalorder %s18, 1
    %p177 = por %p175, %p176
    %p179 = scmp.ne.s32.totalorder %s162, %s178
    %p180 = scmp.eq.s32.totalorder %s18, 0
    %p181 = por %p179, %p180
    %p182 = scmp.le.s32.totalorder 1, %s12
    %p183 = scmp.lt.s32.totalorder %s12, 3
    %p184 = pnand %p182, %p183
    %p185 = pneg %p184
    // Predicated region
    $region9: #{tpu_custom_call.1} parent=5 // pred_check
      _
    $region10: #{tpu_custom_call.1} parent=5 // pred_check_branch
      %187 = sbr.rel (%p184) target = $region12
    $region11: #{tpu_custom_call.1} parent=5 // pred_region
      %s188 = ssub.s32 %s12, 1
      // Predicated region
      $region13: #{tpu_custom_call.1} parent=11 // pred_check
        %p189 = pneg %p85
      $region14: #{tpu_custom_call.1} parent=11 // pred_check_branch
        %191 = sbr.rel (%p189) target = $region16
      $region15: #{tpu_custom_call.1} parent=11 // pred_region
        _
      $region16: #{tpu_custom_call.1} parent=11 // pred_fallthru
        _
      // Predicated region
      $region17: #{tpu_custom_call.1} parent=11 // pred_check
        %p192 = pneg %p106
      $region18: #{tpu_custom_call.1} parent=11 // pred_check_branch
        %194 = sbr.rel (%p192) target = $region20
      $region19: #{tpu_custom_call.1} parent=11 // pred_region
        _
      $region20: #{tpu_custom_call.1} parent=11 // pred_fallthru
        _
      // Predicated region
      $region21: #{tpu_custom_call.1} parent=11 // pred_check
        %p195 = pneg %p127
      $region22: #{tpu_custom_call.1} parent=11 // pred_check_branch
        %197 = sbr.rel (%p195) target = $region24
      $region23: #{tpu_custom_call.1} parent=11 // pred_region
        _
      $region24: #{tpu_custom_call.1} parent=11 // pred_fallthru
        _
      // Predicated region
      $region25: #{tpu_custom_call.1} parent=11 // pred_check
        %p198 = pneg %p148
      $region26: #{tpu_custom_call.1} parent=11 // pred_check_branch
        %200 = sbr.rel (%p198) target = $region28
      $region27: #{tpu_custom_call.1} parent=11 // pred_region
        _
      $region28: #{tpu_custom_call.1} parent=11 // pred_fallthru
        _
    $region12: #{tpu_custom_call.1} parent=5 // pred_fallthru
      _
    %p201 = scmp.lt.s32.totalorder %s12, 2
    // Predicated region
    $region29: #{tpu_custom_call.1} parent=5 // pred_check
      %p202 = pneg %p201
    $region30: #{tpu_custom_call.1} parent=5 // pred_check_branch
      %204 = sbr.rel (%p202) target = $region32
    $region31: #{tpu_custom_call.1} parent=5 // pred_region
      // Predicated region
      $region33: #{tpu_custom_call.1} parent=31 // pred_check
        %p205 = pneg %p32
      $region34: #{tpu_custom_call.1} parent=31 // pred_check_branch
        %207 = sbr.rel (%p205) target = $region36
      $region35: #{tpu_custom_call.1} parent=31 // pred_region
        %s208 = smul.u32 32, %s12
        %p209 = scmp.lt.s32.totalorder %s208, 63
        %s210 = scalar_select %p209, %s208, 63
        %s211 = smul.addr %s210, 8
        %s212 = scalar_lea.vmem %s0, %s211
        %s213 = smul.u32 32, %s12
      $region36: #{tpu_custom_call.1} parent=31 // pred_fallthru
        _
      // Predicated region
      $region37: #{tpu_custom_call.1} parent=31 // pred_check
        %p214 = pneg %p58
      $region38: #{tpu_custom_call.1} parent=31 // pred_check_branch
        %216 = sbr.rel (%p214) target = $region40
      $region39: #{tpu_custom_call.1} parent=31 // pred_region
        %s217 = smul.u32 32, %s12
        %p218 = scmp.lt.s32.totalorder %s217, 63
        %s219 = scalar_select %p218, %s217, 63
        %s220 = smul.addr %s219, 8
        %s221 = scalar_lea.vmem %s1, %s220
        %s222 = smul.u32 32, %s12
      $region40: #{tpu_custom_call.1} parent=31 // pred_fallthru
        _
    $region32: #{tpu_custom_call.1} parent=5 // pred_fallthru
      _
    %p223 = scmp.le.s32.totalorder 1, %s12
    %p224 = scmp.lt.s32.totalorder %s12, 3
    %p225 = pnand %p223, %p224
    %p226 = pneg %p225
    // Predicated region
    $region41: #{tpu_custom_call.1} parent=5 // pred_check
      _
    $region42: #{tpu_custom_call.1} parent=5 // pred_check_branch
      %228 = sbr.rel (%p225) target = $region44
    $region43: #{tpu_custom_call.1} parent=5 // pred_region
      %s229 = ssub.s32 %s12, 1
      %s230 = smul.u32 32, %s17
      %p231 = scmp.lt.s32.totalorder %s230, 63
      %s232 = scalar_select %p231, %s230, 63
      %s233 = smul.addr %s232, 8
      %s234 = scalar_lea.vmem %s0, %s233
      %p235 = pneg %p38
      %p236 = pneg %p35
      %s237 = smul.u32 32, %s17
      %p238 = scmp.lt.s32.totalorder %s237, 63
      %s239 = scalar_select %p238, %s237, 63
      %s240 = smul.addr %s239, 8
      %s241 = scalar_lea.vmem %s1, %s240
      %p242 = pneg %p64
      %p243 = pneg %p61
      %p244 = pneg %p85
      %p245 = pneg %p82
      %p246 = pneg %p106
      %p247 = pneg %p103
      %p248 = pneg %p127
      %p249 = pneg %p124
      %p250 = pneg %p148
      %p251 = pneg %p145
      %p252 = pneg %p174
      %p253 = pneg %p171
      %s254 = smul.u32 32, %s17
      %p255 = scmp.lt.s32.totalorder %s254, 63
      %s256 = scalar_select %p255, %s254, 63
      %s257 = smul.addr %s256, 8
      %s258 = scalar_lea.vmem %s6, %s257
      %s259 = smul.u32 32, %s17
      %p260 = scmp.lt.s32.totalorder %s259, 63
      %s261 = scalar_select %p260, %s259, 63
      %s262 = smul.addr %s261, 8
      %s263 = scalar_lea.vmem %s0, %s262
      %s264 = smul.u32 32, %s17
      %s265 = smul.u32 32, %s17
      %p266 = scmp.lt.s32.totalorder %s265, 63
      %s267 = scalar_select %p266, %s265, 63
      %s268 = smul.addr %s267, 8
      %s269 = scalar_lea.vmem %s1, %s268
      %s270 = smul.u32 32, %s17
      %s271 = smul.u32 32, %s17
      %p272 = scmp.lt.s32.totalorder %s271, 63
      %s273 = scalar_select %p272, %s271, 63
      %s274 = smul.addr %s273, 8
      %s275 = scalar_lea.vmem %s6, %s274
      %s276 = smul.u32 32, %s17
      %v277 = vld [vmem:[%s269] sm:$0xff]
      %v278 = vld [vmem:[%s269 + $0x8] sm:$0xff]
      %v279 = vld [vmem:[%s269 + $0x10] sm:$0xff]
      %v280 = vld [vmem:[%s269 + $0x18] sm:$0xff]
      %v281 = vld [vmem:[%s269 + $0x20] sm:$0xff]
      %v282 = vld [vmem:[%s269 + $0x28] sm:$0xff]
      %v283 = vld [vmem:[%s269 + $0x30] sm:$0xff]
      %v284 = vld [vmem:[%s269 + $0x38] sm:$0xff]
      %v285 = vld [vmem:[%s269 + $0x40] sm:$0xff]
      %v286 = vld [vmem:[%s269 + $0x48] sm:$0xff]
      %v287 = vld [vmem:[%s269 + $0x50] sm:$0xff]
      %v288 = vld [vmem:[%s269 + $0x58] sm:$0xff]
      %v289 = vld [vmem:[%s269 + $0x60] sm:$0xff]
      %v290 = vld [vmem:[%s269 + $0x68] sm:$0xff]
      %v291 = vld [vmem:[%s269 + $0x70] sm:$0xff]
      %v292 = vld [vmem:[%s269 + $0x78] sm:$0xff]
      %v293 = vld [vmem:[%s269 + $0x80] sm:$0xff]
      %v294 = vld [vmem:[%s269 + $0x88] sm:$0xff]
      %v295 = vld [vmem:[%s269 + $0x90] sm:$0xff]
      %v296 = vld [vmem:[%s269 + $0x98] sm:$0xff]
      %v297 = vld [vmem:[%s269 + $0xa0] sm:$0xff]
      %v298 = vld [vmem:[%s269 + $0xa8] sm:$0xff]
      %v299 = vld [vmem:[%s269 + $0xb0] sm:$0xff]
      %v300 = vld [vmem:[%s269 + $0xb8] sm:$0xff]
      %v301 = vld [vmem:[%s269 + $0xc0] sm:$0xff]
      %v302 = vld [vmem:[%s269 + $0xc8] sm:$0xff]
      %v303 = vld [vmem:[%s269 + $0xd0] sm:$0xff]
      %v304 = vld [vmem:[%s269 + $0xd8] sm:$0xff]
      %v305 = vld [vmem:[%s269 + $0xe0] sm:$0xff]
      %v306 = vld [vmem:[%s269 + $0xe8] sm:$0xff]
      %v307 = vld [vmem:[%s269 + $0xf0] sm:$0xff]
      %v308 = vld [vmem:[%s269 + $0xf8] sm:$0xff]
      %v309 = vld [vmem:[%s2] sm:$0xff]
      %v310 = vld [vmem:[%s2 + $0x8] sm:$0xff]
      %v311 = vld [vmem:[%s2 + $0x10] sm:$0xff]
      %v312 = vld [vmem:[%s2 + $0x18] sm:$0xff]
      %v313 = vld [vmem:[%s3] sm:$0x1]
      %v315 = vlaneseq
      %v316 = vshrl.u32 %v315, 7
      %v317 = vsub.s32 0, %v316
      %v318 = vrot.slane %v313, %v317
      %vm320 = vcmask 261120
      %v322 = vsel %vm320, %v277, 0
      %v325 = vsel %vm320, %v278, 0
      %v328 = vsel %vm320, %v279, 0
      %v331 = vsel %vm320, %v280, 0
      %v334 = vsel %vm320, %v281, 0
      %v337 = vsel %vm320, %v282, 0
      %v340 = vsel %vm320, %v283, 0
      %v343 = vsel %vm320, %v284, 0
      %v346 = vsel %vm320, %v285, 0
      %v349 = vsel %vm320, %v286, 0
      %v352 = vsel %vm320, %v287, 0
      %v355 = vsel %vm320, %v288, 0
      %v358 = vsel %vm320, %v289, 0
      %v361 = vsel %vm320, %v290, 0
      %v364 = vsel %vm320, %v291, 0
      %v367 = vsel %vm320, %v292, 0
      %v370 = vsel %vm320, %v293, 0
      %v373 = vsel %vm320, %v294, 0
      %v376 = vsel %vm320, %v295, 0
      %v379 = vsel %vm320, %v296, 0
      %v382 = vsel %vm320, %v297, 0
      %v385 = vsel %vm320, %v298, 0
      %v388 = vsel %vm320, %v299, 0
      %v391 = vsel %vm320, %v300, 0
      %v394 = vsel %vm320, %v301, 0
      %v397 = vsel %vm320, %v302, 0
      %v400 = vsel %vm320, %v303, 0
      %v403 = vsel %vm320, %v304, 0
      %v406 = vsel %vm320, %v305, 0
      %v409 = vsel %vm320, %v306, 0
      %v412 = vsel %vm320, %v307, 0
      %v415 = vsel %vm320, %v308, 0
      %417 = vmatprep.subr.mxu0 0.0
      %418 = vmatpush1.msra.mxu0 %v309
      %419 = vmatprep.subr.mxu0 0.0
      %420 = vmatpush1.msra.mxu0 %v310
      %421 = vmatprep.subr.mxu0 0.0
      %422 = vmatpush1.msra.mxu0 %v311
      %423 = vmatprep.subr.mxu0 0.0
      %424 = vmatpush1.msra.mxu0 %v312
      %425 = vmatprep.subr.mxu0 0.0
      %426 = vmatpush1.msra.mxu0 0.0
      %427 = vmatprep.subr.mxu0 0.0
      %428 = vmatpush1.msra.mxu0 0.0
      %429 = vmatprep.subr.mxu0 0.0
      %430 = vmatpush1.msra.mxu0 0.0
      %431 = vmatprep.subr.mxu0 0.0
      %432 = vmatpush1.msra.mxu0 0.0
      %433 = vmatprep.subr.mxu0 0.0
      %434 = vmatpush1.msra.mxu0 0.0
      %435 = vmatprep.subr.mxu0 0.0
      %436 = vmatpush1.msra.mxu0 0.0
      %437 = vmatprep.subr.mxu0 0.0
      %438 = vmatpush1.msra.mxu0 0.0
      %439 = vmatprep.subr.mxu0 0.0
      %440 = vmatpush1.msra.mxu0 0.0
      %441 = vmatprep.subr.mxu0 0.0
      %442 = vmatpush1.msra.mxu0 0.0
      %443 = vmatprep.subr.mxu0 0.0
      %444 = vmatpush1.msra.mxu0 0.0
      %445 = vmatprep.subr.mxu0 0.0
      %446 = vmatpush1.msra.mxu0 0.0
      %447 = vmatprep.subr.mxu0 0.0
      %448 = vmatpush1.msra.mxu0 0.0
      %449 = vmatprep.subr.mxu0 0.0
      %450 = vmatpush1.msra.mxu0 0.0
      %451 = vmatprep.subr.mxu0 0.0
      %452 = vmatpush1.msra.mxu0 0.0
      %453 = vmatprep.subr.mxu0 0.0
      %454 = vmatpush1.msra.mxu0 0.0
      %455 = vmatprep.subr.mxu0 0.0
      %456 = vmatpush1.msra.mxu0 0.0
      %457 = vmatprep.subr.mxu0 0.0
      %458 = vmatpush1.msra.mxu0 0.0
      %459 = vmatprep.subr.mxu0 0.0
      %460 = vmatpush1.msra.mxu0 0.0
      %461 = vmatprep.subr.mxu0 0.0
      %462 = vmatpush1.msra.mxu0 0.0
      %463 = vmatprep.subr.mxu0 0.0
      %464 = vmatpush1.msra.mxu0 0.0
      %465 = vmatprep.subr.mxu0 0.0
      %466 = vmatpush1.msra.mxu0 0.0
      %467 = vmatprep.subr.mxu0 0.0
      %468 = vmatpush1.msra.mxu0 0.0
      %469 = vmatprep.subr.mxu0 0.0
      %470 = vmatpush1.msra.mxu0 0.0
      %471 = vmatprep.subr.mxu0 0.0
      %472 = vmatpush1.msra.mxu0 0.0
      %473 = vmatprep.subr.mxu0 0.0
      %474 = vmatpush1.msra.mxu0 0.0
      %475 = vmatprep.subr.mxu0 0.0
      %476 = vmatpush1.msra.mxu0 0.0
      %477 = vmatprep.subr.mxu0 0.0
      %478 = vmatpush1.msra.mxu0 0.0
      %479 = vmatprep.subr.mxu0 0.0
      %480 = vmatpush1.msra.mxu0 0.0
      %481 = vmatprep.mubr.f32.mxu0 0.0
      %482 = vmatmul.mubr.f32.gmra.mrb[0].mxu0 %v322
      %v483 = vpop.f32.mrb[0].mxu0
      %v484 = vadd.f32 %v318, %v483
      %v485 = vpop.f32.mrb[0].mxu0
      %486 = vmatprep.mubr.f32.mxu0 0.0
      %487 = vmatmul.mubr.f32.gmra.mrb[0].mxu0 %v325
      %v488 = vpop.f32.mrb[0].mxu0
      %v489 = vadd.f32 %v318, %v488
      %v490 = vpop.f32.mrb[0].mxu0
      %491 = vmatprep.mubr.f32.mxu0 0.0
      %492 = vmatmul.mubr.f32.gmra.mrb[0].mxu0 %v328
      %v493 = vpop.f32.mrb[0].mxu0
      %v494 = vadd.f32 %v318, %v493
      %v495 = vpop.f32.mrb[0].mxu0
      %496 = vmatprep.mubr.f32.mxu0 0.0
      %497 = vmatmul.mubr.f32.gmra.mrb[0].mxu0 %v331
      %v498 = vpop.f32.mrb[0].mxu0
      %v499 = vadd.f32 %v318, %v498
      %v500 = vpop.f32.mrb[0].mxu0
      %501 = vmatprep.mubr.f32.mxu0 0.0
      %502 = vmatmul.mubr.f32.gmra.mrb[0].mxu0 %v334
      %v503 = vpop.f32.mrb[0].mxu0
      %v504 = vadd.f32 %v318, %v503
      %v505 = vpop.f32.mrb[0].mxu0
      %506 = vmatprep.mubr.f32.mxu0 0.0
      %507 = vmatmul.mubr.f32.gmra.mrb[0].mxu0 %v337
      %v508 = vpop.f32.mrb[0].mxu0
      %v509 = vadd.f32 %v318, %v508
      %v510 = vpop.f32.mrb[0].mxu0
      %511 = vmatprep.mubr.f32.mxu0 0.0
      %512 = vmatmul.mubr.f32.gmra.mrb[0].mxu0 %v340
      %v513 = vpop.f32.mrb[0].mxu0
      %v514 = vadd.f32 %v318, %v513
      %v515 = vpop.f32.mrb[0].mxu0
      %516 = vmatprep.mubr.f32.mxu0 0.0
      %517 = vmatmul.mubr.f32.gmra.mrb[0].mxu0 %v343
      %v518 = vpop.f32.mrb[0].mxu0
      %v519 = vadd.f32 %v318, %v518
      %v520 = vpop.f32.mrb[0].mxu0
      %521 = vmatprep.mubr.f32.mxu0 0.0
      %522 = vmatmul.mubr.f32.gmra.mrb[0].mxu0 %v346
      %v523 = vpop.f32.mrb[0].mxu0
      %v524 = vadd.f32 %v318, %v523
      %v525 = vpop.f32.mrb[0].mxu0
      %526 = vmatprep.mubr.f32.mxu0 0.0
      %527 = vmatmul.mubr.f32.gmra.mrb[0].mxu0 %v349
      %v528 = vpop.f32.mrb[0].mxu0
      %v529 = vadd.f32 %v318, %v528
      %v530 = vpop.f32.mrb[0].mxu0
      %531 = vmatprep.mubr.f32.mxu0 0.0
      %532 = vmatmul.mubr.f32.gmra.mrb[0].mxu0 %v352
      %v533 = vpop.f32.mrb[0].mxu0
      %v534 = vadd.f32 %v318, %v533
      %v535 = vpop.f32.mrb[0].mxu0
      %536 = vmatprep.mubr.f32.mxu0 0.0
      %537 = vmatmul.mubr.f32.gmra.mrb[0].mxu0 %v355
      %v538 = vpop.f32.mrb[0].mxu0
      %v539 = vadd.f32 %v318, %v538
      %v540 = vpop.f32.mrb[0].mxu0
      %541 = vmatprep.mubr.f32.mxu0 0.0
      %542 = vmatmul.mubr.f32.gmra.mrb[0].mxu0 %v358
      %v543 = vpop.f32.mrb[0].mxu0
      %v544 = vadd.f32 %v318, %v543
      %v545 = vpop.f32.mrb[0].mxu0
      %546 = vmatprep.mubr.f32.mxu0 0.0
      %547 = vmatmul.mubr.f32.gmra.mrb[0].mxu0 %v361
      %v548 = vpop.f32.mrb[0].mxu0
      %v549 = vadd.f32 %v318, %v548
      %v550 = vpop.f32.mrb[0].mxu0
      %551 = vmatprep.mubr.f32.mxu0 0.0
      %552 = vmatmul.mubr.f32.gmra.mrb[0].mxu0 %v364
      %v553 = vpop.f32.mrb[0].mxu0
      %v554 = vadd.f32 %v318, %v553
      %v555 = vpop.f32.mrb[0].mxu0
      %556 = vmatprep.mubr.f32.mxu0 0.0
      %557 = vmatmul.mubr.f32.gmra.mrb[0].mxu0 %v367
      %v558 = vpop.f32.mrb[0].mxu0
      %v559 = vadd.f32 %v318, %v558
      %v560 = vpop.f32.mrb[0].mxu0
      %561 = vmatprep.mubr.f32.mxu0 0.0
      %562 = vmatmul.mubr.f32.gmra.mrb[0].mxu0 %v370
      %v563 = vpop.f32.mrb[0].mxu0
      %v564 = vadd.f32 %v318, %v563
      %v565 = vpop.f32.mrb[0].mxu0
      %566 = vmatprep.mubr.f32.mxu0 0.0
      %567 = vmatmul.mubr.f32.gmra.mrb[0].mxu0 %v373
      %v568 = vpop.f32.mrb[0].mxu0
      %v569 = vadd.f32 %v318, %v568
      %v570 = vpop.f32.mrb[0].mxu0
      %571 = vmatprep.mubr.f32.mxu0 0.0
      %572 = vmatmul.mubr.f32.gmra.mrb[0].mxu0 %v376
      %v573 = vpop.f32.mrb[0].mxu0
      %v574 = vadd.f32 %v318, %v573
      %v575 = vpop.f32.mrb[0].mxu0
      %576 = vmatprep.mubr.f32.mxu0 0.0
      %577 = vmatmul.mubr.f32.gmra.mrb[0].mxu0 %v379
      %v578 = vpop.f32.mrb[0].mxu0
      %v579 = vadd.f32 %v318, %v578
      %v580 = vpop.f32.mrb[0].mxu0
      %581 = vmatprep.mubr.f32.mxu0 0.0
      %582 = vmatmul.mubr.f32.gmra.mrb[0].mxu0 %v382
      %v583 = vpop.f32.mrb[0].mxu0
      %v584 = vadd.f32 %v318, %v583
      %v585 = vpop.f32.mrb[0].mxu0
      %586 = vmatprep.mubr.f32.mxu0 0.0
      %587 = vmatmul.mubr.f32.gmra.mrb[0].mxu0 %v385
      %v588 = vpop.f32.mrb[0].mxu0
      %v589 = vadd.f32 %v318, %v588
      %v590 = vpop.f32.mrb[0].mxu0
      %591 = vmatprep.mubr.f32.mxu0 0.0
      %592 = vmatmul.mubr.f32.gmra.mrb[0].mxu0 %v388
      %v593 = vpop.f32.mrb[0].mxu0
      %v594 = vadd.f32 %v318, %v593
      %v595 = vpop.f32.mrb[0].mxu0
      %596 = vmatprep.mubr.f32.mxu0 0.0
      %597 = vmatmul.mubr.f32.gmra.mrb[0].mxu0 %v391
      %v598 = vpop.f32.mrb[0].mxu0
      %v599 = vadd.f32 %v318, %v598
      %v600 = vpop.f32.mrb[0].mxu0
      %601 = vmatprep.mubr.f32.mxu0 0.0
      %602 = vmatmul.mubr.f32.gmra.mrb[0].mxu0 %v394
      %v603 = vpop.f32.mrb[0].mxu0
      %v604 = vadd.f32 %v318, %v603
      %v605 = vpop.f32.mrb[0].mxu0
      %606 = vmatprep.mubr.f32.mxu0 0.0
      %607 = vmatmul.mubr.f32.gmra.mrb[0].mxu0 %v397
      %v608 = vpop.f32.mrb[0].mxu0
      %v609 = vadd.f32 %v318, %v608
      %v610 = vpop.f32.mrb[0].mxu0
      %611 = vmatprep.mubr.f32.mxu0 0.0
      %612 = vmatmul.mubr.f32.gmra.mrb[0].mxu0 %v400
      %v613 = vpop.f32.mrb[0].mxu0
      %v614 = vadd.f32 %v318, %v613
      %v615 = vpop.f32.mrb[0].mxu0
      %616 = vmatprep.mubr.f32.mxu0 0.0
      %617 = vmatmul.mubr.f32.gmra.mrb[0].mxu0 %v403
      %v618 = vpop.f32.mrb[0].mxu0
      %v619 = vadd.f32 %v318, %v618
      %v620 = vpop.f32.mrb[0].mxu0
      %621 = vmatprep.mubr.f32.mxu0 0.0
      %622 = vmatmul.mubr.f32.gmra.mrb[0].mxu0 %v406
      %v623 = vpop.f32.mrb[0].mxu0
      %v624 = vadd.f32 %v318, %v623
      %v625 = vpop.f32.mrb[0].mxu0
      %626 = vmatprep.mubr.f32.mxu0 0.0
      %627 = vmatmul.mubr.f32.gmra.mrb[0].mxu0 %v409
      %v628 = vpop.f32.mrb[0].mxu0
      %v629 = vadd.f32 %v318, %v628
      %v630 = vpop.f32.mrb[0].mxu0
      %631 = vmatprep.mubr.f32.mxu0 0.0
      %632 = vmatmul.mubr.f32.gmra.mrb[0].mxu0 %v412
      %v633 = vpop.f32.mrb[0].mxu0
      %v634 = vadd.f32 %v318, %v633
      %v635 = vpop.f32.mrb[0].mxu0
      %636 = vmatprep.mubr.f32.mxu0 0.0
      %637 = vmatmul.mubr.f32.gmra.mrb[0].mxu0 %v415
      %v638 = vpop.f32.mrb[0].mxu0
      %v639 = vadd.f32 %v318, %v638
      %v640 = vpop.f32.mrb[0].mxu0
      %641 = vdwg.mxu0
      %v642 = vmax.f32 %v484, 0.0
      %v643 = vmax.f32 %v489, 0.0
      %v644 = vmax.f32 %v494, 0.0
      %v645 = vmax.f32 %v499, 0.0
      %v646 = vmax.f32 %v504, 0.0
      %v647 = vmax.f32 %v509, 0.0
      %v648 = vmax.f32 %v514, 0.0
      %v649 = vmax.f32 %v519, 0.0
      %v650 = vmax.f32 %v524, 0.0
      %v651 = vmax.f32 %v529, 0.0
      %v652 = vmax.f32 %v534, 0.0
      %v653 = vmax.f32 %v539, 0.0
      %v654 = vmax.f32 %v544, 0.0
      %v655 = vmax.f32 %v549, 0.0
      %v656 = vmax.f32 %v554, 0.0
      %v657 = vmax.f32 %v559, 0.0
      %v658 = vmax.f32 %v564, 0.0
      %v659 = vmax.f32 %v569, 0.0
      %v660 = vmax.f32 %v574, 0.0
      %v661 = vmax.f32 %v579, 0.0
      %v662 = vmax.f32 %v584, 0.0
      %v663 = vmax.f32 %v589, 0.0
      %v664 = vmax.f32 %v594, 0.0
      %v665 = vmax.f32 %v599, 0.0
      %v666 = vmax.f32 %v604, 0.0
      %v667 = vmax.f32 %v609, 0.0
      %v668 = vmax.f32 %v614, 0.0
      %v669 = vmax.f32 %v619, 0.0
      %v670 = vmax.f32 %v624, 0.0
      %v671 = vmax.f32 %v629, 0.0
      %v672 = vmax.f32 %v634, 0.0
      %v673 = vmax.f32 %v639, 0.0
      %v674 = vld [vmem:[%s4] sm:$0xff]
      %v675 = vld [vmem:[%s4 + $0x8] sm:$0xff]
      %v676 = vld [vmem:[%s4 + $0x10] sm:$0xff]
      %v677 = vld [vmem:[%s4 + $0x18] sm:$0xff]
      %v678 = vld [vmem:[%s4 + $0x20] sm:$0xff]
      %v679 = vld [vmem:[%s4 + $0x28] sm:$0xff]
      %v680 = vld [vmem:[%s4 + $0x30] sm:$0xff]
      %v681 = vld [vmem:[%s4 + $0x38] sm:$0xff]
      %v682 = vld [vmem:[%s4 + $0x40] sm:$0xff]
      %v683 = vld [vmem:[%s4 + $0x48] sm:$0xff]
      %v684 = vld [vmem:[%s4 + $0x50] sm:$0xff]
      %v685 = vld [vmem:[%s4 + $0x58] sm:$0xff]
      %v686 = vld [vmem:[%s4 + $0x60] sm:$0xff]
      %v687 = vld [vmem:[%s4 + $0x68] sm:$0xff]
      %v688 = vld [vmem:[%s4 + $0x70] sm:$0xff]
      %v689 = vld [vmem:[%s4 + $0x78] sm:$0xff]
      %v690 = vld [vmem:[%s5] sm:$0x1]
      %v692 = vlaneseq
      %v693 = vshrl.u32 %v692, 7
      %v694 = vsub.s32 0, %v693
      %v695 = vrot.slane %v690, %v694
      %697 = vmatprep.subr.mxu0 0.0
      %698 = vmatpush1.msra.mxu0 %v674
      %699 = vmatprep.subr.mxu0 0.0
      %700 = vmatpush1.msra.mxu0 %v675
      %701 = vmatprep.subr.mxu0 0.0
      %702 = vmatpush1.msra.mxu0 %v676
      %703 = vmatprep.subr.mxu0 0.0
      %704 = vmatpush1.msra.mxu0 %v677
      %705 = vmatprep.subr.mxu0 0.0
      %706 = vmatpush1.msra.mxu0 %v678
      %707 = vmatprep.subr.mxu0 0.0
      %708 = vmatpush1.msra.mxu0 %v679
      %709 = vmatprep.subr.mxu0 0.0
      %710 = vmatpush1.msra.mxu0 %v680
      %711 = vmatprep.subr.mxu0 0.0
      %712 = vmatpush1.msra.mxu0 %v681
      %713 = vmatprep.subr.mxu0 0.0
      %714 = vmatpush1.msra.mxu0 %v682
      %715 = vmatprep.subr.mxu0 0.0
      %716 = vmatpush1.msra.mxu0 %v683
      %717 = vmatprep.subr.mxu0 0.0
      %718 = vmatpush1.msra.mxu0 %v684
      %719 = vmatprep.subr.mxu0 0.0
      %720 = vmatpush1.msra.mxu0 %v685
      %721 = vmatprep.subr.mxu0 0.0
      %722 = vmatpush1.msra.mxu0 %v686
      %723 = vmatprep.subr.mxu0 0.0
      %724 = vmatpush1.msra.mxu0 %v687
      %725 = vmatprep.subr.mxu0 0.0
      %726 = vmatpush1.msra.mxu0 %v688
      %727 = vmatprep.subr.mxu0 0.0
      %728 = vmatpush1.msra.mxu0 %v689
      %729 = vmatprep.subr.mxu0 0.0
      %730 = vmatpush1.msra.mxu0 0.0
      %731 = vmatprep.subr.mxu0 0.0
      %732 = vmatpush1.msra.mxu0 0.0
      %733 = vmatprep.subr.mxu0 0.0
      %734 = vmatpush1.msra.mxu0 0.0
      %735 = vmatprep.subr.mxu0 0.0
      %736 = vmatpush1.msra.mxu0 0.0
      %737 = vmatprep.subr.mxu0 0.0
      %738 = vmatpush1.msra.mxu0 0.0
      %739 = vmatprep.subr.mxu0 0.0
      %740 = vmatpush1.msra.mxu0 0.0
      %741 = vmatprep.subr.mxu0 0.0
      %742 = vmatpush1.msra.mxu0 0.0
      %743 = vmatprep.subr.mxu0 0.0
      %744 = vmatpush1.msra.mxu0 0.0
      %745 = vmatprep.subr.mxu0 0.0
      %746 = vmatpush1.msra.mxu0 0.0
      %747 = vmatprep.subr.mxu0 0.0
      %748 = vmatpush1.msra.mxu0 0.0
      %749 = vmatprep.subr.mxu0 0.0
      %750 = vmatpush1.msra.mxu0 0.0
      %751 = vmatprep.subr.mxu0 0.0
      %752 = vmatpush1.msra.mxu0 0.0
      %753 = vmatprep.subr.mxu0 0.0
      %754 = vmatpush1.msra.mxu0 0.0
      %755 = vmatprep.subr.mxu0 0.0
      %756 = vmatpush1.msra.mxu0 0.0
      %757 = vmatprep.subr.mxu0 0.0
      %758 = vmatpush1.msra.mxu0 0.0
      %759 = vmatprep.subr.mxu0 0.0
      %760 = vmatpush1.msra.mxu0 0.0
      %761 = vmatprep.mubr.f32.mxu0 0.0
      %762 = vmatmul.mubr.f32.gmra.mrb[0].mxu0 %v642
      %v763 = vpop.f32.mrb[0].mxu0
      %v764 = vadd.f32 %v695, %v763
      %v765 = vpop.f32.mrb[0].mxu0
      %766 = vmatprep.mubr.f32.mxu0 0.0
      %767 = vmatmul.mubr.f32.gmra.mrb[0].mxu0 %v643
      %v768 = vpop.f32.mrb[0].mxu0
      %v769 = vadd.f32 %v695, %v768
      %v770 = vpop.f32.mrb[0].mxu0
      %771 = vmatprep.mubr.f32.mxu0 0.0
      %772 = vmatmul.mubr.f32.gmra.mrb[0].mxu0 %v644
      %v773 = vpop.f32.mrb[0].mxu0
      %v774 = vadd.f32 %v695, %v773
      %v775 = vpop.f32.mrb[0].mxu0
      %776 = vmatprep.mubr.f32.mxu0 0.0
      %777 = vmatmul.mubr.f32.gmra.mrb[0].mxu0 %v645
      %v778 = vpop.f32.mrb[0].mxu0
      %v779 = vadd.f32 %v695, %v778
      %v780 = vpop.f32.mrb[0].mxu0
      %781 = vmatprep.mubr.f32.mxu0 0.0
      %782 = vmatmul.mubr.f32.gmra.mrb[0].mxu0 %v646
      %v783 = vpop.f32.mrb[0].mxu0
      %v784 = vadd.f32 %v695, %v783
      %v785 = vpop.f32.mrb[0].mxu0
      %786 = vmatprep.mubr.f32.mxu0 0.0
      %787 = vmatmul.mubr.f32.gmra.mrb[0].mxu0 %v647
      %v788 = vpop.f32.mrb[0].mxu0
      %v789 = vadd.f32 %v695, %v788
      %v790 = vpop.f32.mrb[0].mxu0
      %791 = vmatprep.mubr.f32.mxu0 0.0
      %792 = vmatmul.mubr.f32.gmra.mrb[0].mxu0 %v648
      %v793 = vpop.f32.mrb[0].mxu0
      %v794 = vadd.f32 %v695, %v793
      %v795 = vpop.f32.mrb[0].mxu0
      %796 = vmatprep.mubr.f32.mxu0 0.0
      %797 = vmatmul.mubr.f32.gmra.mrb[0].mxu0 %v649
      %v798 = vpop.f32.mrb[0].mxu0
      %v799 = vadd.f32 %v695, %v798
      %v800 = vpop.f32.mrb[0].mxu0
      %801 = vmatprep.mubr.f32.mxu0 0.0
      %802 = vmatmul.mubr.f32.gmra.mrb[0].mxu0 %v650
      %v803 = vpop.f32.mrb[0].mxu0
      %v804 = vadd.f32 %v695, %v803
      %v805 = vpop.f32.mrb[0].mxu0
      %806 = vmatprep.mubr.f32.mxu0 0.0
      %807 = vmatmul.mubr.f32.gmra.mrb[0].mxu0 %v651
      %v808 = vpop.f32.mrb[0].mxu0
      %v809 = vadd.f32 %v695, %v808
      %v810 = vpop.f32.mrb[0].mxu0
      %811 = vmatprep.mubr.f32.mxu0 0.0
      %812 = vmatmul.mubr.f32.gmra.mrb[0].mxu0 %v652
      %v813 = vpop.f32.mrb[0].mxu0
      %v814 = vadd.f32 %v695, %v813
      %v815 = vpop.f32.mrb[0].mxu0
      %816 = vmatprep.mubr.f32.mxu0 0.0
      %817 = vmatmul.mubr.f32.gmra.mrb[0].mxu0 %v653
      %v818 = vpop.f32.mrb[0].mxu0
      %v819 = vadd.f32 %v695, %v818
      %v820 = vpop.f32.mrb[0].mxu0
      %821 = vmatprep.mubr.f32.mxu0 0.0
      %822 = vmatmul.mubr.f32.gmra.mrb[0].mxu0 %v654
      %v823 = vpop.f32.mrb[0].mxu0
      %v824 = vadd.f32 %v695, %v823
      %v825 = vpop.f32.mrb[0].mxu0
      %826 = vmatprep.mubr.f32.mxu0 0.0
      %827 = vmatmul.mubr.f32.gmra.mrb[0].mxu0 %v655
      %v828 = vpop.f32.mrb[0].mxu0
      %v829 = vadd.f32 %v695, %v828
      %v830 = vpop.f32.mrb[0].mxu0
      %831 = vmatprep.mubr.f32.mxu0 0.0
      %832 = vmatmul.mubr.f32.gmra.mrb[0].mxu0 %v656
      %v833 = vpop.f32.mrb[0].mxu0
      %v834 = vadd.f32 %v695, %v833
      %v835 = vpop.f32.mrb[0].mxu0
      %836 = vmatprep.mubr.f32.mxu0 0.0
      %837 = vmatmul.mubr.f32.gmra.mrb[0].mxu0 %v657
      %v838 = vpop.f32.mrb[0].mxu0
      %v839 = vadd.f32 %v695, %v838
      %v840 = vpop.f32.mrb[0].mxu0
      %841 = vmatprep.mubr.f32.mxu0 0.0
      %842 = vmatmul.mubr.f32.gmra.mrb[0].mxu0 %v658
      %v843 = vpop.f32.mrb[0].mxu0
      %v844 = vadd.f32 %v695, %v843
      %v845 = vpop.f32.mrb[0].mxu0
      %846 = vmatprep.mubr.f32.mxu0 0.0
      %847 = vmatmul.mubr.f32.gmra.mrb[0].mxu0 %v659
      %v848 = vpop.f32.mrb[0].mxu0
      %v849 = vadd.f32 %v695, %v848
      %v850 = vpop.f32.mrb[0].mxu0
      %851 = vmatprep.mubr.f32.mxu0 0.0
      %852 = vmatmul.mubr.f32.gmra.mrb[0].mxu0 %v660
      %v853 = vpop.f32.mrb[0].mxu0
      %v854 = vadd.f32 %v695, %v853
      %v855 = vpop.f32.mrb[0].mxu0
      %856 = vmatprep.mubr.f32.mxu0 0.0
      %857 = vmatmul.mubr.f32.gmra.mrb[0].mxu0 %v661
      %v858 = vpop.f32.mrb[0].mxu0
      %v859 = vadd.f32 %v695, %v858
      %v860 = vpop.f32.mrb[0].mxu0
      %861 = vmatprep.mubr.f32.mxu0 0.0
      %862 = vmatmul.mubr.f32.gmra.mrb[0].mxu0 %v662
      %v863 = vpop.f32.mrb[0].mxu0
      %v864 = vadd.f32 %v695, %v863
      %v865 = vpop.f32.mrb[0].mxu0
      %866 = vmatprep.mubr.f32.mxu0 0.0
      %867 = vmatmul.mubr.f32.gmra.mrb[0].mxu0 %v663
      %v868 = vpop.f32.mrb[0].mxu0
      %v869 = vadd.f32 %v695, %v868
      %v870 = vpop.f32.mrb[0].mxu0
      %871 = vmatprep.mubr.f32.mxu0 0.0
      %872 = vmatmul.mubr.f32.gmra.mrb[0].mxu0 %v664
      %v873 = vpop.f32.mrb[0].mxu0
      %v874 = vadd.f32 %v695, %v873
      %v875 = vpop.f32.mrb[0].mxu0
      %876 = vmatprep.mubr.f32.mxu0 0.0
      %877 = vmatmul.mubr.f32.gmra.mrb[0].mxu0 %v665
      %v878 = vpop.f32.mrb[0].mxu0
      %v879 = vadd.f32 %v695, %v878
      %v880 = vpop.f32.mrb[0].mxu0
      %881 = vmatprep.mubr.f32.mxu0 0.0
      %882 = vmatmul.mubr.f32.gmra.mrb[0].mxu0 %v666
      %v883 = vpop.f32.mrb[0].mxu0
      %v884 = vadd.f32 %v695, %v883
      %v885 = vpop.f32.mrb[0].mxu0
      %886 = vmatprep.mubr.f32.mxu0 0.0
      %887 = vmatmul.mubr.f32.gmra.mrb[0].mxu0 %v667
      %v888 = vpop.f32.mrb[0].mxu0
      %v889 = vadd.f32 %v695, %v888
      %v890 = vpop.f32.mrb[0].mxu0
      %891 = vmatprep.mubr.f32.mxu0 0.0
      %892 = vmatmul.mubr.f32.gmra.mrb[0].mxu0 %v668
      %v893 = vpop.f32.mrb[0].mxu0
      %v894 = vadd.f32 %v695, %v893
      %v895 = vpop.f32.mrb[0].mxu0
      %896 = vmatprep.mubr.f32.mxu0 0.0
      %897 = vmatmul.mubr.f32.gmra.mrb[0].mxu0 %v669
      %v898 = vpop.f32.mrb[0].mxu0
      %v899 = vadd.f32 %v695, %v898
      %v900 = vpop.f32.mrb[0].mxu0
      %901 = vmatprep.mubr.f32.mxu0 0.0
      %902 = vmatmul.mubr.f32.gmra.mrb[0].mxu0 %v670
      %v903 = vpop.f32.mrb[0].mxu0
      %v904 = vadd.f32 %v695, %v903
      %v905 = vpop.f32.mrb[0].mxu0
      %906 = vmatprep.mubr.f32.mxu0 0.0
      %907 = vmatmul.mubr.f32.gmra.mrb[0].mxu0 %v671
      %v908 = vpop.f32.mrb[0].mxu0
      %v909 = vadd.f32 %v695, %v908
      %v910 = vpop.f32.mrb[0].mxu0
      %911 = vmatprep.mubr.f32.mxu0 0.0
      %912 = vmatmul.mubr.f32.gmra.mrb[0].mxu0 %v672
      %v913 = vpop.f32.mrb[0].mxu0
      %v914 = vadd.f32 %v695, %v913
      %v915 = vpop.f32.mrb[0].mxu0
      %916 = vmatprep.mubr.f32.mxu0 0.0
      %917 = vmatmul.mubr.f32.gmra.mrb[0].mxu0 %v673
      %v918 = vpop.f32.mrb[0].mxu0
      %v919 = vadd.f32 %v695, %v918
      %v920 = vpop.f32.mrb[0].mxu0
      %921 = vdwg.mxu0
      %v922 = vlaneseq
      %v923 = vand.u32 %v922, 127
      %v924 = vld [vmem:[%s263] sm:$0xff]
      %v925 = vld [vmem:[%s263 + $0x8] sm:$0xff]
      %v926 = vld [vmem:[%s263 + $0x10] sm:$0xff]
      %v927 = vld [vmem:[%s263 + $0x18] sm:$0xff]
      %v928 = vld [vmem:[%s263 + $0x20] sm:$0xff]
      %v929 = vld [vmem:[%s263 + $0x28] sm:$0xff]
      %v930 = vld [vmem:[%s263 + $0x30] sm:$0xff]
      %v931 = vld [vmem:[%s263 + $0x38] sm:$0xff]
      %v932 = vld [vmem:[%s263 + $0x40] sm:$0xff]
      %v933 = vld [vmem:[%s263 + $0x48] sm:$0xff]
      %v934 = vld [vmem:[%s263 + $0x50] sm:$0xff]
      %v935 = vld [vmem:[%s263 + $0x58] sm:$0xff]
      %v936 = vld [vmem:[%s263 + $0x60] sm:$0xff]
      %v937 = vld [vmem:[%s263 + $0x68] sm:$0xff]
      %v938 = vld [vmem:[%s263 + $0x70] sm:$0xff]
      %v939 = vld [vmem:[%s263 + $0x78] sm:$0xff]
      %v940 = vld [vmem:[%s263 + $0x80] sm:$0xff]
      %v941 = vld [vmem:[%s263 + $0x88] sm:$0xff]
      %v942 = vld [vmem:[%s263 + $0x90] sm:$0xff]
      %v943 = vld [vmem:[%s263 + $0x98] sm:$0xff]
      %v944 = vld [vmem:[%s263 + $0xa0] sm:$0xff]
      %v945 = vld [vmem:[%s263 + $0xa8] sm:$0xff]
      %v946 = vld [vmem:[%s263 + $0xb0] sm:$0xff]
      %v947 = vld [vmem:[%s263 + $0xb8] sm:$0xff]
      %v948 = vld [vmem:[%s263 + $0xc0] sm:$0xff]
      %v949 = vld [vmem:[%s263 + $0xc8] sm:$0xff]
      %v950 = vld [vmem:[%s263 + $0xd0] sm:$0xff]
      %v951 = vld [vmem:[%s263 + $0xd8] sm:$0xff]
      %v952 = vld [vmem:[%s263 + $0xe0] sm:$0xff]
      %v953 = vld [vmem:[%s263 + $0xe8] sm:$0xff]
      %v954 = vld [vmem:[%s263 + $0xf0] sm:$0xff]
      %v955 = vld [vmem:[%s263 + $0xf8] sm:$0xff]
      %956 = vset.pattern.permute.xlu0 0
      %957 = vperm.xlu0 %956, %v924
      %v958 = vpop.permute.xlu0 %957
      %959 = vset.pattern.permute.xlu0 0
      %960 = vperm.xlu0 %959, %v925
      %v961 = vpop.permute.xlu0 %960
      %962 = vset.pattern.permute.xlu0 0
      %963 = vperm.xlu0 %962, %v926
      %v964 = vpop.permute.xlu0 %963
      %965 = vset.pattern.permute.xlu0 0
      %966 = vperm.xlu0 %965, %v927
      %v967 = vpop.permute.xlu0 %966
      %968 = vset.pattern.permute.xlu0 0
      %969 = vperm.xlu0 %968, %v928
      %v970 = vpop.permute.xlu0 %969
      %971 = vset.pattern.permute.xlu0 0
      %972 = vperm.xlu0 %971, %v929
      %v973 = vpop.permute.xlu0 %972
      %974 = vset.pattern.permute.xlu0 0
      %975 = vperm.xlu0 %974, %v930
      %v976 = vpop.permute.xlu0 %975
      %977 = vset.pattern.permute.xlu0 0
      %978 = vperm.xlu0 %977, %v931
      %v979 = vpop.permute.xlu0 %978
      %980 = vset.pattern.permute.xlu0 0
      %981 = vperm.xlu0 %980, %v932
      %v982 = vpop.permute.xlu0 %981
      %983 = vset.pattern.permute.xlu0 0
      %984 = vperm.xlu0 %983, %v933
      %v985 = vpop.permute.xlu0 %984
      %986 = vset.pattern.permute.xlu0 0
      %987 = vperm.xlu0 %986, %v934
      %v988 = vpop.permute.xlu0 %987
      %989 = vset.pattern.permute.xlu0 0
      %990 = vperm.xlu0 %989, %v935
      %v991 = vpop.permute.xlu0 %990
      %992 = vset.pattern.permute.xlu0 0
      %993 = vperm.xlu0 %992, %v936
      %v994 = vpop.permute.xlu0 %993
      %995 = vset.pattern.permute.xlu0 0
      %996 = vperm.xlu0 %995, %v937
      %v997 = vpop.permute.xlu0 %996
      %998 = vset.pattern.permute.xlu0 0
      %999 = vperm.xlu0 %998, %v938
      %v1000 = vpop.permute.xlu0 %999
      %1001 = vset.pattern.permute.xlu0 0
      %1002 = vperm.xlu0 %1001, %v939
      %v1003 = vpop.permute.xlu0 %1002
      %1004 = vset.pattern.permute.xlu0 0
      %1005 = vperm.xlu0 %1004, %v940
      %v1006 = vpop.permute.xlu0 %1005
      %1007 = vset.pattern.permute.xlu0 0
      %1008 = vperm.xlu0 %1007, %v941
      %v1009 = vpop.permute.xlu0 %1008
      %1010 = vset.pattern.permute.xlu0 0
      %1011 = vperm.xlu0 %1010, %v942
      %v1012 = vpop.permute.xlu0 %1011
      %1013 = vset.pattern.permute.xlu0 0
      %1014 = vperm.xlu0 %1013, %v943
      %v1015 = vpop.permute.xlu0 %1014
      %1016 = vset.pattern.permute.xlu0 0
      %1017 = vperm.xlu0 %1016, %v944
      %v1018 = vpop.permute.xlu0 %1017
      %1019 = vset.pattern.permute.xlu0 0
      %1020 = vperm.xlu0 %1019, %v945
      %v1021 = vpop.permute.xlu0 %1020
      %1022 = vset.pattern.permute.xlu0 0
      %1023 = vperm.xlu0 %1022, %v946
      %v1024 = vpop.permute.xlu0 %1023
      %1025 = vset.pattern.permute.xlu0 0
      %1026 = vperm.xlu0 %1025, %v947
      %v1027 = vpop.permute.xlu0 %1026
      %1028 = vset.pattern.permute.xlu0 0
      %1029 = vperm.xlu0 %1028, %v948
      %v1030 = vpop.permute.xlu0 %1029
      %1031 = vset.pattern.permute.xlu0 0
      %1032 = vperm.xlu0 %1031, %v949
      %v1033 = vpop.permute.xlu0 %1032
      %1034 = vset.pattern.permute.xlu0 0
      %1035 = vperm.xlu0 %1034, %v950
      %v1036 = vpop.permute.xlu0 %1035
      %1037 = vset.pattern.permute.xlu0 0
      %1038 = vperm.xlu0 %1037, %v951
      %v1039 = vpop.permute.xlu0 %1038
      %1040 = vset.pattern.permute.xlu0 0
      %1041 = vperm.xlu0 %1040, %v952
      %v1042 = vpop.permute.xlu0 %1041
      %1043 = vset.pattern.permute.xlu0 0
      %1044 = vperm.xlu0 %1043, %v953
      %v1045 = vpop.permute.xlu0 %1044
      %1046 = vset.pattern.permute.xlu0 0
      %1047 = vperm.xlu0 %1046, %v954
      %v1048 = vpop.permute.xlu0 %1047
      %1049 = vset.pattern.permute.xlu0 0
      %1050 = vperm.xlu0 %1049, %v955
      %v1051 = vpop.permute.xlu0 %1050
      %vm1052 = vcmp.eq.s32.totalorder %v923, %v958
      %vm1053 = vcmp.eq.s32.totalorder %v923, %v961
      %vm1054 = vcmp.eq.s32.totalorder %v923, %v964
      %vm1055 = vcmp.eq.s32.totalorder %v923, %v967
      %vm1056 = vcmp.eq.s32.totalorder %v923, %v970
      %vm1057 = vcmp.eq.s32.totalorder %v923, %v973
      %vm1058 = vcmp.eq.s32.totalorder %v923, %v976
      %vm1059 = vcmp.eq.s32.totalorder %v923, %v979
      %vm1060 = vcmp.eq.s32.totalorder %v923, %v982
      %vm1061 = vcmp.eq.s32.totalorder %v923, %v985
      %vm1062 = vcmp.eq.s32.totalorder %v923, %v988
      %vm1063 = vcmp.eq.s32.totalorder %v923, %v991
      %vm1064 = vcmp.eq.s32.totalorder %v923, %v994
      %vm1065 = vcmp.eq.s32.totalorder %v923, %v997
      %vm1066 = vcmp.eq.s32.totalorder %v923, %v1000
      %vm1067 = vcmp.eq.s32.totalorder %v923, %v1003
      %vm1068 = vcmp.eq.s32.totalorder %v923, %v1006
      %vm1069 = vcmp.eq.s32.totalorder %v923, %v1009
      %vm1070 = vcmp.eq.s32.totalorder %v923, %v1012
      %vm1071 = vcmp.eq.s32.totalorder %v923, %v1015
      %vm1072 = vcmp.eq.s32.totalorder %v923, %v1018
      %vm1073 = vcmp.eq.s32.totalorder %v923, %v1021
      %vm1074 = vcmp.eq.s32.totalorder %v923, %v1024
      %vm1075 = vcmp.eq.s32.totalorder %v923, %v1027
      %vm1076 = vcmp.eq.s32.totalorder %v923, %v1030
      %vm1077 = vcmp.eq.s32.totalorder %v923, %v1033
      %vm1078 = vcmp.eq.s32.totalorder %v923, %v1036
      %vm1079 = vcmp.eq.s32.totalorder %v923, %v1039
      %vm1080 = vcmp.eq.s32.totalorder %v923, %v1042
      %vm1081 = vcmp.eq.s32.totalorder %v923, %v1045
      %vm1082 = vcmp.eq.s32.totalorder %v923, %v1048
      %vm1083 = vcmp.eq.s32.totalorder %v923, %v1051
      %v1084 = vsel %vm1052, %v764, 0.0
      %v1085 = vsel %vm1053, %v769, 0.0
      %v1086 = vsel %vm1054, %v774, 0.0
      %v1087 = vsel %vm1055, %v779, 0.0
      %v1088 = vsel %vm1056, %v784, 0.0
      %v1089 = vsel %vm1057, %v789, 0.0
      %v1090 = vsel %vm1058, %v794, 0.0
      %v1091 = vsel %vm1059, %v799, 0.0
      %v1092 = vsel %vm1060, %v804, 0.0
      %v1093 = vsel %vm1061, %v809, 0.0
      %v1094 = vsel %vm1062, %v814, 0.0
      %v1095 = vsel %vm1063, %v819, 0.0
      %v1096 = vsel %vm1064, %v824, 0.0
      %v1097 = vsel %vm1065, %v829, 0.0
      %v1098 = vsel %vm1066, %v834, 0.0
      %v1099 = vsel %vm1067, %v839, 0.0
      %v1100 = vsel %vm1068, %v844, 0.0
      %v1101 = vsel %vm1069, %v849, 0.0
      %v1102 = vsel %vm1070, %v854, 0.0
      %v1103 = vsel %vm1071, %v859, 0.0
      %v1104 = vsel %vm1072, %v864, 0.0
      %v1105 = vsel %vm1073, %v869, 0.0
      %v1106 = vsel %vm1074, %v874, 0.0
      %v1107 = vsel %vm1075, %v879, 0.0
      %v1108 = vsel %vm1076, %v884, 0.0
      %v1109 = vsel %vm1077, %v889, 0.0
      %v1110 = vsel %vm1078, %v894, 0.0
      %v1111 = vsel %vm1079, %v899, 0.0
      %v1112 = vsel %vm1080, %v904, 0.0
      %v1113 = vsel %vm1081, %v909, 0.0
      %v1114 = vsel %vm1082, %v914, 0.0
      %v1115 = vsel %vm1083, %v919, 0.0
      %1116 = vadd.xlane.f32.xlu0 %v1084
      %v1117 = vpop.xlane.xlu0 %1116
      %1118 = vadd.xlane.f32.xlu0 %v1085
      %v1119 = vpop.xlane.xlu0 %1118
      %1120 = vadd.xlane.f32.xlu0 %v1086
      %v1121 = vpop.xlane.xlu0 %1120
      %1122 = vadd.xlane.f32.xlu0 %v1087
      %v1123 = vpop.xlane.xlu0 %1122
      %1124 = vadd.xlane.f32.xlu0 %v1088
      %v1125 = vpop.xlane.xlu0 %1124
      %1126 = vadd.xlane.f32.xlu0 %v1089
      %v1127 = vpop.xlane.xlu0 %1126
      %1128 = vadd.xlane.f32.xlu0 %v1090
      %v1129 = vpop.xlane.xlu0 %1128
      %1130 = vadd.xlane.f32.xlu0 %v1091
      %v1131 = vpop.xlane.xlu0 %1130
      %1132 = vadd.xlane.f32.xlu0 %v1092
      %v1133 = vpop.xlane.xlu0 %1132
      %1134 = vadd.xlane.f32.xlu0 %v1093
      %v1135 = vpop.xlane.xlu0 %1134
      %1136 = vadd.xlane.f32.xlu0 %v1094
      %v1137 = vpop.xlane.xlu0 %1136
      %1138 = vadd.xlane.f32.xlu0 %v1095
      %v1139 = vpop.xlane.xlu0 %1138
      %1140 = vadd.xlane.f32.xlu0 %v1096
      %v1141 = vpop.xlane.xlu0 %1140
      %1142 = vadd.xlane.f32.xlu0 %v1097
      %v1143 = vpop.xlane.xlu0 %1142
      %1144 = vadd.xlane.f32.xlu0 %v1098
      %v1145 = vpop.xlane.xlu0 %1144
      %1146 = vadd.xlane.f32.xlu0 %v1099
      %v1147 = vpop.xlane.xlu0 %1146
      %1148 = vadd.xlane.f32.xlu0 %v1100
      %v1149 = vpop.xlane.xlu0 %1148
      %1150 = vadd.xlane.f32.xlu0 %v1101
      %v1151 = vpop.xlane.xlu0 %1150
      %1152 = vadd.xlane.f32.xlu0 %v1102
      %v1153 = vpop.xlane.xlu0 %1152
      %1154 = vadd.xlane.f32.xlu0 %v1103
      %v1155 = vpop.xlane.xlu0 %1154
      %1156 = vadd.xlane.f32.xlu0 %v1104
      %v1157 = vpop.xlane.xlu0 %1156
      %1158 = vadd.xlane.f32.xlu0 %v1105
      %v1159 = vpop.xlane.xlu0 %1158
      %1160 = vadd.xlane.f32.xlu0 %v1106
      %v1161 = vpop.xlane.xlu0 %1160
      %1162 = vadd.xlane.f32.xlu0 %v1107
      %v1163 = vpop.xlane.xlu0 %1162
      %1164 = vadd.xlane.f32.xlu0 %v1108
      %v1165 = vpop.xlane.xlu0 %1164
      %1166 = vadd.xlane.f32.xlu0 %v1109
      %v1167 = vpop.xlane.xlu0 %1166
      %1168 = vadd.xlane.f32.xlu0 %v1110
      %v1169 = vpop.xlane.xlu0 %1168
      %1170 = vadd.xlane.f32.xlu0 %v1111
      %v1171 = vpop.xlane.xlu0 %1170
      %1172 = vadd.xlane.f32.xlu0 %v1112
      %v1173 = vpop.xlane.xlu0 %1172
      %1174 = vadd.xlane.f32.xlu0 %v1113
      %v1175 = vpop.xlane.xlu0 %1174
      %1176 = vadd.xlane.f32.xlu0 %v1114
      %v1177 = vpop.xlane.xlu0 %1176
      %1178 = vadd.xlane.f32.xlu0 %v1115
      %v1179 = vpop.xlane.xlu0 %1178
      %v1180 = vsub.f32 %v764, %v1117
      %v1181 = vsub.f32 %v769, %v1119
      %v1182 = vsub.f32 %v774, %v1121
      %v1183 = vsub.f32 %v779, %v1123
      %v1184 = vsub.f32 %v784, %v1125
      %v1185 = vsub.f32 %v789, %v1127
      %v1186 = vsub.f32 %v794, %v1129
      %v1187 = vsub.f32 %v799, %v1131
      %v1188 = vsub.f32 %v804, %v1133
      %v1189 = vsub.f32 %v809, %v1135
      %v1190 = vsub.f32 %v814, %v1137
      %v1191 = vsub.f32 %v819, %v1139
      %v1192 = vsub.f32 %v824, %v1141
      %v1193 = vsub.f32 %v829, %v1143
      %v1194 = vsub.f32 %v834, %v1145
      %v1195 = vsub.f32 %v839, %v1147
      %v1196 = vsub.f32 %v844, %v1149
      %v1197 = vsub.f32 %v849, %v1151
      %v1198 = vsub.f32 %v854, %v1153
      %v1199 = vsub.f32 %v859, %v1155
      %v1200 = vsub.f32 %v864, %v1157
      %v1201 = vsub.f32 %v869, %v1159
      %v1202 = vsub.f32 %v874, %v1161
      %v1203 = vsub.f32 %v879, %v1163
      %v1204 = vsub.f32 %v884, %v1165
      %v1205 = vsub.f32 %v889, %v1167
      %v1206 = vsub.f32 %v894, %v1169
      %v1207 = vsub.f32 %v899, %v1171
      %v1208 = vsub.f32 %v904, %v1173
      %v1209 = vsub.f32 %v909, %v1175
      %v1210 = vsub.f32 %v914, %v1177
      %v1211 = vsub.f32 %v919, %v1179
      %v1212 = vmul.f32 %v1180, 1.442695
      %v1213 = vpow.pop %v1212
      %v1214 = vmul.f32 %v1181, 1.442695
      %v1215 = vpow.pop %v1214
      %v1216 = vmul.f32 %v1182, 1.442695
      %v1217 = vpow.pop %v1216
      %v1218 = vmul.f32 %v1183, 1.442695
      %v1219 = vpow.pop %v1218
      %v1220 = vmul.f32 %v1184, 1.442695
      %v1221 = vpow.pop %v1220
      %v1222 = vmul.f32 %v1185, 1.442695
      %v1223 = vpow.pop %v1222
      %v1224 = vmul.f32 %v1186, 1.442695
      %v1225 = vpow.pop %v1224
      %v1226 = vmul.f32 %v1187, 1.442695
      %v1227 = vpow.pop %v1226
      %v1228 = vmul.f32 %v1188, 1.442695
      %v1229 = vpow.pop %v1228
      %v1230 = vmul.f32 %v1189, 1.442695
      %v1231 = vpow.pop %v1230
      %v1232 = vmul.f32 %v1190, 1.442695
      %v1233 = vpow.pop %v1232
      %v1234 = vmul.f32 %v1191, 1.442695
      %v1235 = vpow.pop %v1234
      %v1236 = vmul.f32 %v1192, 1.442695
      %v1237 = vpow.pop %v1236
      %v1238 = vmul.f32 %v1193, 1.442695
      %v1239 = vpow.pop %v1238
      %v1240 = vmul.f32 %v1194, 1.442695
      %v1241 = vpow.pop %v1240
      %v1242 = vmul.f32 %v1195, 1.442695
      %v1243 = vpow.pop %v1242
      %v1244 = vmul.f32 %v1196, 1.442695
      %v1245 = vpow.pop %v1244
      %v1246 = vmul.f32 %v1197, 1.442695
      %v1247 = vpow.pop %v1246
      %v1248 = vmul.f32 %v1198, 1.442695
      %v1249 = vpow.pop %v1248
      %v1250 = vmul.f32 %v1199, 1.442695
      %v1251 = vpow.pop %v1250
      %v1252 = vmul.f32 %v1200, 1.442695
      %v1253 = vpow.pop %v1252
      %v1254 = vmul.f32 %v1201, 1.442695
      %v1255 = vpow.pop %v1254
      %v1256 = vmul.f32 %v1202, 1.442695
      %v1257 = vpow.pop %v1256
      %v1258 = vmul.f32 %v1203, 1.442695
      %v1259 = vpow.pop %v1258
      %v1260 = vmul.f32 %v1204, 1.442695
      %v1261 = vpow.pop %v1260
      %v1262 = vmul.f32 %v1205, 1.442695
      %v1263 = vpow.pop %v1262
      %v1264 = vmul.f32 %v1206, 1.442695
      %v1265 = vpow.pop %v1264
      %v1266 = vmul.f32 %v1207, 1.442695
      %v1267 = vpow.pop %v1266
      %v1268 = vmul.f32 %v1208, 1.442695
      %v1269 = vpow.pop %v1268
      %v1270 = vmul.f32 %v1209, 1.442695
      %v1271 = vpow.pop %v1270
      %v1272 = vmul.f32 %v1210, 1.442695
      %v1273 = vpow.pop %v1272
      %v1274 = vmul.f32 %v1211, 1.442695
      %v1275 = vpow.pop %v1274
      %1276 = vadd.xlane.f32.xlu0 %v1213
      %v1277 = vpop.xlane.xlu0 %1276
      %1278 = vadd.xlane.f32.xlu0 %v1215
      %v1279 = vpop.xlane.xlu0 %1278
      %1280 = vadd.xlane.f32.xlu0 %v1217
      %v1281 = vpop.xlane.xlu0 %1280
      %1282 = vadd.xlane.f32.xlu0 %v1219
      %v1283 = vpop.xlane.xlu0 %1282
      %1284 = vadd.xlane.f32.xlu0 %v1221
      %v1285 = vpop.xlane.xlu0 %1284
      %1286 = vadd.xlane.f32.xlu0 %v1223
      %v1287 = vpop.xlane.xlu0 %1286
      %1288 = vadd.xlane.f32.xlu0 %v1225
      %v1289 = vpop.xlane.xlu0 %1288
      %1290 = vadd.xlane.f32.xlu0 %v1227
      %v1291 = vpop.xlane.xlu0 %1290
      %1292 = vadd.xlane.f32.xlu0 %v1229
      %v1293 = vpop.xlane.xlu0 %1292
      %1294 = vadd.xlane.f32.xlu0 %v1231
      %v1295 = vpop.xlane.xlu0 %1294
      %1296 = vadd.xlane.f32.xlu0 %v1233
      %v1297 = vpop.xlane.xlu0 %1296
      %1298 = vadd.xlane.f32.xlu0 %v1235
      %v1299 = vpop.xlane.xlu0 %1298
      %1300 = vadd.xlane.f32.xlu0 %v1237
      %v1301 = vpop.xlane.xlu0 %1300
      %1302 = vadd.xlane.f32.xlu0 %v1239
      %v1303 = vpop.xlane.xlu0 %1302
      %1304 = vadd.xlane.f32.xlu0 %v1241
      %v1305 = vpop.xlane.xlu0 %1304
      %1306 = vadd.xlane.f32.xlu0 %v1243
      %v1307 = vpop.xlane.xlu0 %1306
      %1308 = vadd.xlane.f32.xlu0 %v1245
      %v1309 = vpop.xlane.xlu0 %1308
      %1310 = vadd.xlane.f32.xlu0 %v1247
      %v1311 = vpop.xlane.xlu0 %1310
      %1312 = vadd.xlane.f32.xlu0 %v1249
      %v1313 = vpop.xlane.xlu0 %1312
      %1314 = vadd.xlane.f32.xlu0 %v1251
      %v1315 = vpop.xlane.xlu0 %1314
      %1316 = vadd.xlane.f32.xlu0 %v1253
      %v1317 = vpop.xlane.xlu0 %1316
      %1318 = vadd.xlane.f32.xlu0 %v1255
      %v1319 = vpop.xlane.xlu0 %1318
      %1320 = vadd.xlane.f32.xlu0 %v1257
      %v1321 = vpop.xlane.xlu0 %1320
      %1322 = vadd.xlane.f32.xlu0 %v1259
      %v1323 = vpop.xlane.xlu0 %1322
      %1324 = vadd.xlane.f32.xlu0 %v1261
      %v1325 = vpop.xlane.xlu0 %1324
      %1326 = vadd.xlane.f32.xlu0 %v1263
      %v1327 = vpop.xlane.xlu0 %1326
      %1328 = vadd.xlane.f32.xlu0 %v1265
      %v1329 = vpop.xlane.xlu0 %1328
      %1330 = vadd.xlane.f32.xlu0 %v1267
      %v1331 = vpop.xlane.xlu0 %1330
      %1332 = vadd.xlane.f32.xlu0 %v1269
      %v1333 = vpop.xlane.xlu0 %1332
      %1334 = vadd.xlane.f32.xlu0 %v1271
      %v1335 = vpop.xlane.xlu0 %1334
      %1336 = vadd.xlane.f32.xlu0 %v1273
      %v1337 = vpop.xlane.xlu0 %1336
      %1338 = vadd.xlane.f32.xlu0 %v1275
      %v1339 = vpop.xlane.xlu0 %1338
      %vm1340 = vcmask 7168
      %1341 = vst.msk [vmem:[%s275] sm:$0xff] %vm1340, %v1277
      %1342 = vst.msk [vmem:[%s275 + $0x8] sm:$0xff] %vm1340, %v1279
      %1343 = vst.msk [vmem:[%s275 + $0x10] sm:$0xff] %vm1340, %v1281
      %1344 = vst.msk [vmem:[%s275 + $0x18] sm:$0xff] %vm1340, %v1283
      %1345 = vst.msk [vmem:[%s275 + $0x20] sm:$0xff] %vm1340, %v1285
      %1346 = vst.msk [vmem:[%s275 + $0x28] sm:$0xff] %vm1340, %v1287
      %1347 = vst.msk [vmem:[%s275 + $0x30] sm:$0xff] %vm1340, %v1289
      %1348 = vst.msk [vmem:[%s275 + $0x38] sm:$0xff] %vm1340, %v1291
      %1349 = vst.msk [vmem:[%s275 + $0x40] sm:$0xff] %vm1340, %v1293
      %1350 = vst.msk [vmem:[%s275 + $0x48] sm:$0xff] %vm1340, %v1295
      %1351 = vst.msk [vmem:[%s275 + $0x50] sm:$0xff] %vm1340, %v1297
      %1352 = vst.msk [vmem:[%s275 + $0x58] sm:$0xff] %vm1340, %v1299
      %1353 = vst.msk [vmem:[%s275 + $0x60] sm:$0xff] %vm1340, %v1301
      %1354 = vst.msk [vmem:[%s275 + $0x68] sm:$0xff] %vm1340, %v1303
      %1355 = vst.msk [vmem:[%s275 + $0x70] sm:$0xff] %vm1340, %v1305
      %1356 = vst.msk [vmem:[%s275 + $0x78] sm:$0xff] %vm1340, %v1307
      %1357 = vst.msk [vmem:[%s275 + $0x80] sm:$0xff] %vm1340, %v1309
      %1358 = vst.msk [vmem:[%s275 + $0x88] sm:$0xff] %vm1340, %v1311
      %1359 = vst.msk [vmem:[%s275 + $0x90] sm:$0xff] %vm1340, %v1313
      %1360 = vst.msk [vmem:[%s275 + $0x98] sm:$0xff] %vm1340, %v1315
      %1361 = vst.msk [vmem:[%s275 + $0xa0] sm:$0xff] %vm1340, %v1317
      %1362 = vst.msk [vmem:[%s275 + $0xa8] sm:$0xff] %vm1340, %v1319
      %1363 = vst.msk [vmem:[%s275 + $0xb0] sm:$0xff] %vm1340, %v1321
      %1364 = vst.msk [vmem:[%s275 + $0xb8] sm:$0xff] %vm1340, %v1323
      %1365 = vst.msk [vmem:[%s275 + $0xc0] sm:$0xff] %vm1340, %v1325
      %1366 = vst.msk [vmem:[%s275 + $0xc8] sm:$0xff] %vm1340, %v1327
      %1367 = vst.msk [vmem:[%s275 + $0xd0] sm:$0xff] %vm1340, %v1329
      %1368 = vst.msk [vmem:[%s275 + $0xd8] sm:$0xff] %vm1340, %v1331
      %1369 = vst.msk [vmem:[%s275 + $0xe0] sm:$0xff] %vm1340, %v1333
      %1370 = vst.msk [vmem:[%s275 + $0xe8] sm:$0xff] %vm1340, %v1335
      %1371 = vst.msk [vmem:[%s275 + $0xf0] sm:$0xff] %vm1340, %v1337
      %1372 = vst.msk [vmem:[%s275 + $0xf8] sm:$0xff] %vm1340, %v1339
      %s1373 = smul.u32 32, %s17
      %p1374 = scmp.lt.s32.totalorder %s1373, 63
      %s1375 = scalar_select %p1374, %s1373, 63
      %s1376 = smul.addr %s1375, 8
      %s1377 = scalar_lea.vmem %s6, %s1376
      // Predicated region
      $region45: #{tpu_custom_call.1} parent=43 // pred_check
        %p1378 = pneg %p171
      $region46: #{tpu_custom_call.1} parent=43 // pred_check_branch
        %1380 = sbr.rel (%p1378) target = $region48
      $region47: #{tpu_custom_call.1} parent=43 // pred_region
        %s1381 = smul.u32 32, %s17
      $region48: #{tpu_custom_call.1} parent=43 // pred_fallthru
        _
    $region44: #{tpu_custom_call.1} parent=5 // pred_fallthru
      _
    %p1382 = scmp.le.s32.totalorder 2, %s12
    // Predicated region
    $region49: #{tpu_custom_call.1} parent=5 // pred_check
      %p1383 = pneg %p1382
    $region50: #{tpu_custom_call.1} parent=5 // pred_check_branch
      %1385 = sbr.rel (%p1383) target = $region52
    $region51: #{tpu_custom_call.1} parent=5 // pred_region
      %s1386 = ssub.s32 %s12, 2
      // Predicated region
      $region53: #{tpu_custom_call.1} parent=51 // pred_check
        %p1387 = pneg %p177
      $region54: #{tpu_custom_call.1} parent=51 // pred_check_branch
        %1389 = sbr.rel (%p1387) target = $region56
      $region55: #{tpu_custom_call.1} parent=51 // pred_region
        %s1390 = smul.u32 32, %s18
        %p1391 = scmp.lt.s32.totalorder %s1390, 63
        %s1392 = scalar_select %p1391, %s1390, 63
        %s1393 = smul.addr %s1392, 8
        %s1394 = scalar_lea.vmem %s6, %s1393
      $region56: #{tpu_custom_call.1} parent=51 // pred_fallthru
        _
    $region52: #{tpu_custom_call.1} parent=5 // pred_fallthru
      _
  $region6: #{tpu_custom_call.1} parent=0 // loop_footer
    %s16 = sadd.s32 1, %s12
  $region7: #{tpu_custom_call.1} parent=0 // loop_footer_branch
    %11 = sbr.rel target = $region3
  $region8: #{tpu_custom_call.1} parent=0 // loop_exit
    _

</llo_original>
